<compile_context>
chip_gen: v6e
topology: v6e:2x2x1
jax: 0.10.0
libtpu: 0.0.40
codegen_flags: <defaults>
</compile_context>

<pallas_src>
import functools

import jax
import jax.numpy as jnp
from jax import lax
from jax.experimental import pallas as pl
from jax.experimental.pallas import tpu as pltpu

IN_EPS = 1e-3                         # InstanceNorm2d eps in the module
BN_EPS = 1e-5                         # SyncBatchNorm default eps
BN_SCALE = 1.0 / (1.0 + BN_EPS) ** 0.5


# ----------------------------------------------------------------------------
# Fused kernel: InstanceNorm -> (folded BN) -> ReLU -> 1x1 conv -> softmax -> pool
# Single grid step; small batch unrolled inside the body.
# ----------------------------------------------------------------------------
def _diff_pool_kernel(x_ref, w_ref, o_ref, *, batch):
    w = w_ref[...]                                        # (P, C) f32, BN folded

    for bi in range(batch):                               # B is tiny & static
        x = x_ref[bi]                                     # (C, N) f32 in VMEM

        # InstanceNorm2d over the (N, 1) spatial dims (biased var, eps=1e-3),
        # folded-BN scale already in w, then ReLU.
        mean = jnp.mean(x, axis=1, keepdims=True)
        xc = x - mean
        var = jnp.mean(xc * xc, axis=1, keepdims=True)
        a = jnp.maximum(xc * lax.rsqrt(var + IN_EPS), 0.0)          # (C, N)

        # 1x1 conv: (P, C) @ (C, N).  Bias dropped: softmax over N cancels it.
        embed = jnp.dot(w, a, preferred_element_type=jnp.float32)   # (P, N)

        # Softmax over the N points (lane axis); reciprocal on the EUP.
        m = jnp.max(embed, axis=-1, keepdims=True)
        e = jnp.exp(embed - m)
        s = e * pl.reciprocal(jnp.sum(e, axis=-1, keepdims=True), approx=True)

        # Pool: S @ X^T, contracting N directly -> (P, C) lane-dense store.
        o_ref[bi] = lax.dot_general(s, x, (((1,), (1,)), ((), ())),
                                    preferred_element_type=jnp.float32)


def fold_bn_into_weight(w):
    """One-time parameter prep: fold eval-mode SyncBatchNorm scale into W."""
    return (w * BN_SCALE).astype(jnp.float32)


def diff_pool_forward(x, w_eff):
    """diff_pool forward.

    x:     (B, C, N, 1) float32  (PyTorch NCHW with W=1)
    w_eff: (P, C)       float32  (1x1 conv weight with BN scale pre-folded)
    returns (B, C, P, 1) float32

    The Conv2d bias is intentionally not an input: softmax over N makes a
    per-output-point constant bias algebraically irrelevant to the output.
    """
    B, C, N, _ = x.shape
    P = w_eff.shape[0]

    x3 = x.reshape(B, C, N)                               # free metadata reshape

    cost = pl.CostEstimate(
        flops=4 * B * P * C * N,                          # conv + pool matmuls
        transcendentals=B * P * N + B * C + B * P,        # exp, rsqrt, recip
        bytes_accessed=(B * C * N + P * C + B * P * C) * 4,
    )

    out_bpc = pl.pallas_call(
        functools.partial(_diff_pool_kernel, batch=B),
        out_shape=jax.ShapeDtypeStruct((B, P, C), jnp.float32),
        grid=(1,),                                        # single step: overhead-bound workload
        in_specs=[
            pl.BlockSpec((B, C, N), lambda i: (0, 0, 0)),
            pl.BlockSpec((P, C), lambda i: (0, 0)),
        ],
        out_specs=pl.BlockSpec((B, P, C), lambda i: (0, 0, 0)),
        cost_estimate=cost,
    )(x3, w_eff)

    # (B, P, C) -> (B, C, P, 1): tiny wrapper-side permute keeps stores lane-dense.
    return jnp.transpose(out_bpc, (0, 2, 1))[..., None]


# ----------------------------------------------------------------------------
# Pure-JAX reference (f32, WITH the conv bias, to prove bias cancellation)
# ----------------------------------------------------------------------------
def _reference(x, w, b):
    x3 = x[..., 0]                                        # (B, C, N)
    mean = jnp.mean(x3, axis=2, keepdims=True)
    var = jnp.mean((x3 - mean) ** 2, axis=2, keepdims=True)
    xn = (x3 - mean) / jnp.sqrt(var + IN_EPS)
    xn = xn * BN_SCALE                                    # eval-mode SyncBatchNorm
    a = jax.nn.relu(xn)
    embed = jnp.einsum('pc,bcn->bpn', w, a) + b[None, :, None]
    S = jax.nn.softmax(embed, axis=2)                     # softmax over N
    out = jnp.einsum('bcn,bpn->bcp', x3, S)               # x @ S^T
    return out[..., None]                                 # (B, C, P, 1)


# ----------------------------------------------------------------------------
# Main
# ----------------------------------------------------------------------------
if __name__ == "__main__":
    B, C, N, P = 2, 32, 128, 8   # batch, in_channel, points, output_points

    key = jax.random.PRNGKey(0)
    kx, kw, kb = jax.random.split(key, 3)
    x = jax.random.normal(kx, (B, C, N, 1), jnp.float32)
    w = jax.random.normal(kw, (P, C), jnp.float32) * (1.0 / C ** 0.5)
    b = 0.01 * jax.random.normal(kb, (P,), jnp.float32)   # only used by reference

    w_eff = fold_bn_into_weight(w)                        # one-time parameter prep

    fwd = jax.jit(diff_pool_forward)
    out = fwd(x, w_eff)
    jax.block_until_ready(out)

    assert out.shape == (B, C, P, 1), out.shape
    assert bool(jnp.all(jnp.isfinite(out)))

    ref = _reference(x, w, b)
    max_err = float(jnp.max(jnp.abs(out - ref)))
    assert max_err < 2e-2, f"max abs err vs reference: {max_err}"

    print("KERNEL_OK")
</pallas_src>

<mosaic_0001>
module attributes {stable_mosaic.version = 11 : i64} {
  func.func @_diff_pool_kernel(%arg0: i32, %arg1: memref<2x32x128xf32, #tpu.memory_space<vmem>>, %arg2: memref<8x32xf32, #tpu.memory_space<vmem>>, %arg3: memref<2x8x32xf32, #tpu.memory_space<vmem>>) attributes {dimension_semantics = [#tpu.dimension_semantics<arbitrary>], iteration_bounds = array<i64: 1>, scalar_prefetch = 0 : i64, scratch_operands = 0 : i64, tpu.core_type = #tpu.core_type<tc>, window_params = [{pipeline_mode = #tpu.pipeline_mode<synchronous>, transform_indices = @transform_0, window_bounds = array<i64: 2, 32, 128>}, {pipeline_mode = #tpu.pipeline_mode<synchronous>, transform_indices = @transform_1, window_bounds = array<i64: 8, 32>}, {pipeline_mode = #tpu.pipeline_mode<synchronous>, transform_indices = @transform_2, window_bounds = array<i64: 2, 8, 32>}]} {
    %c0 = arith.constant 0 : index
    %c0_0 = arith.constant 0 : index
    %0 = vector.load %arg2[%c0, %c0_0] : memref<8x32xf32, #tpu.memory_space<vmem>>, vector<8x32xf32>
    %c0_1 = arith.constant 0 : index
    %c0_2 = arith.constant 0 : index
    %c0_3 = arith.constant 0 : index
    %1 = vector.load %arg1[%c0_1, %c0_2, %c0_3] : memref<2x32x128xf32, #tpu.memory_space<vmem>>, vector<1x32x128xf32>
    %2 = vector.shape_cast %1 : vector<1x32x128xf32> to vector<32x128xf32>
    %cst = arith.constant dense<0.000000e+00> : vector<32xf32>
    %3 = vector.multi_reduction <add>, %2, %cst [1] : vector<32x128xf32> to vector<32xf32>
    %4 = vector.shape_cast %3 : vector<32xf32> to vector<32x1xf32>
    %cst_4 = arith.constant 1.280000e+02 : f32
    %5 = vector.broadcast %cst_4 : f32 to vector<32x1xf32>
    %6 = arith.divf %4, %5 : vector<32x1xf32>
    %7 = vector.broadcast %6 : vector<32x1xf32> to vector<32x128xf32>
    %8 = arith.subf %2, %7 : vector<32x128xf32>
    %9 = arith.mulf %8, %8 : vector<32x128xf32>
    %cst_5 = arith.constant dense<0.000000e+00> : vector<32xf32>
    %10 = vector.multi_reduction <add>, %9, %cst_5 [1] : vector<32x128xf32> to vector<32xf32>
    %11 = vector.shape_cast %10 : vector<32xf32> to vector<32x1xf32>
    %cst_6 = arith.constant 1.280000e+02 : f32
    %12 = vector.broadcast %cst_6 : f32 to vector<32x1xf32>
    %13 = arith.divf %11, %12 : vector<32x1xf32>
    %cst_7 = arith.constant 1.000000e-03 : f32
    %14 = vector.broadcast %cst_7 : f32 to vector<32x1xf32>
    %15 = arith.addf %13, %14 : vector<32x1xf32>
    %16 = math.rsqrt %15 : vector<32x1xf32>
    %17 = vector.broadcast %16 : vector<32x1xf32> to vector<32x128xf32>
    %18 = arith.mulf %8, %17 : vector<32x128xf32>
    %cst_8 = arith.constant 0.000000e+00 : f32
    %19 = vector.broadcast %cst_8 : f32 to vector<32x128xf32>
    %20 = arith.maximumf %18, %19 : vector<32x128xf32>
    %cst_9 = arith.constant dense<0.000000e+00> : vector<8x128xf32>
    %21 = tpu.matmul %0, %20, %cst_9 {dimension_numbers = #tpu.dot_dimension_numbers<[1], [0], [0], [1], [0, 0, 1, 1], [], []>} : vector<8x32xf32>, vector<32x128xf32>, vector<8x128xf32> -> vector<8x128xf32>
    %cst_10 = arith.constant dense<0xFF800000> : vector<8xf32>
    %22 = vector.multi_reduction <maximumf>, %21, %cst_10 [1] : vector<8x128xf32> to vector<8xf32>
    %23 = vector.shape_cast %22 : vector<8xf32> to vector<8x1xf32>
    %24 = vector.broadcast %23 : vector<8x1xf32> to vector<8x128xf32>
    %25 = arith.subf %21, %24 : vector<8x128xf32>
    %26 = math.exp %25 : vector<8x128xf32>
    %cst_11 = arith.constant dense<0.000000e+00> : vector<8xf32>
    %27 = vector.multi_reduction <add>, %26, %cst_11 [1] : vector<8x128xf32> to vector<8xf32>
    %28 = vector.shape_cast %27 : vector<8xf32> to vector<8x1xf32>
    %29 = tpu.reciprocal %28 {approx = true} : vector<8x1xf32> -> vector<8x1xf32>
    %30 = vector.broadcast %29 : vector<8x1xf32> to vector<8x128xf32>
    %31 = arith.mulf %26, %30 : vector<8x128xf32>
    %cst_12 = arith.constant dense<0.000000e+00> : vector<8x32xf32>
    %32 = tpu.matmul %31, %2, %cst_12 {dimension_numbers = #tpu.dot_dimension_numbers<[1], [1], [0], [0], [0, 0, 1, 0], [], []>} : vector<8x128xf32>, vector<32x128xf32>, vector<8x32xf32> -> vector<8x32xf32>
    %c0_13 = arith.constant 0 : index
    %c0_14 = arith.constant 0 : index
    %c0_15 = arith.constant 0 : index
    %33 = vector.load %arg3[%c0_13, %c0_14, %c0_15] : memref<2x8x32xf32, #tpu.memory_space<vmem>>, vector<1x8x32xf32>
    %34 = vector.shape_cast %33 : vector<1x8x32xf32> to vector<8x32xf32>
    %35 = vector.shape_cast %32 : vector<8x32xf32> to vector<1x8x32xf32>
    tpu.vector_store %arg3[%c0_13, %c0_14, %c0_15], %35 {strides = array<i32>} : memref<2x8x32xf32, #tpu.memory_space<vmem>>, vector<1x8x32xf32>,
    %c1 = arith.constant 1 : index
    %c0_16 = arith.constant 0 : index
    %c0_17 = arith.constant 0 : index
    %36 = vector.load %arg1[%c1, %c0_16, %c0_17] : memref<2x32x128xf32, #tpu.memory_space<vmem>>, vector<1x32x128xf32>
    %37 = vector.shape_cast %36 : vector<1x32x128xf32> to vector<32x128xf32>
    %cst_18 = arith.constant dense<0.000000e+00> : vector<32xf32>
    %38 = vector.multi_reduction <add>, %37, %cst_18 [1] : vector<32x128xf32> to vector<32xf32>
    %39 = vector.shape_cast %38 : vector<32xf32> to vector<32x1xf32>
    %cst_19 = arith.constant 1.280000e+02 : f32
    %40 = vector.broadcast %cst_19 : f32 to vector<32x1xf32>
    %41 = arith.divf %39, %40 : vector<32x1xf32>
    %42 = vector.broadcast %41 : vector<32x1xf32> to vector<32x128xf32>
    %43 = arith.subf %37, %42 : vector<32x128xf32>
    %44 = arith.mulf %43, %43 : vector<32x128xf32>
    %cst_20 = arith.constant dense<0.000000e+00> : vector<32xf32>
    %45 = vector.multi_reduction <add>, %44, %cst_20 [1] : vector<32x128xf32> to vector<32xf32>
    %46 = vector.shape_cast %45 : vector<32xf32> to vector<32x1xf32>
    %cst_21 = arith.constant 1.280000e+02 : f32
    %47 = vector.broadcast %cst_21 : f32 to vector<32x1xf32>
    %48 = arith.divf %46, %47 : vector<32x1xf32>
    %cst_22 = arith.constant 1.000000e-03 : f32
    %49 = vector.broadcast %cst_22 : f32 to vector<32x1xf32>
    %50 = arith.addf %48, %49 : vector<32x1xf32>
    %51 = math.rsqrt %50 : vector<32x1xf32>
    %52 = vector.broadcast %51 : vector<32x1xf32> to vector<32x128xf32>
    %53 = arith.mulf %43, %52 : vector<32x128xf32>
    %cst_23 = arith.constant 0.000000e+00 : f32
    %54 = vector.broadcast %cst_23 : f32 to vector<32x128xf32>
    %55 = arith.maximumf %53, %54 : vector<32x128xf32>
    %cst_24 = arith.constant dense<0.000000e+00> : vector<8x128xf32>
    %56 = tpu.matmul %0, %55, %cst_24 {dimension_numbers = #tpu.dot_dimension_numbers<[1], [0], [0], [1], [0, 0, 1, 1], [], []>} : vector<8x32xf32>, vector<32x128xf32>, vector<8x128xf32> -> vector<8x128xf32>
    %cst_25 = arith.constant dense<0xFF800000> : vector<8xf32>
    %57 = vector.multi_reduction <maximumf>, %56, %cst_25 [1] : vector<8x128xf32> to vector<8xf32>
    %58 = vector.shape_cast %57 : vector<8xf32> to vector<8x1xf32>
    %59 = vector.broadcast %58 : vector<8x1xf32> to vector<8x128xf32>
    %60 = arith.subf %56, %59 : vector<8x128xf32>
    %61 = math.exp %60 : vector<8x128xf32>
    %cst_26 = arith.constant dense<0.000000e+00> : vector<8xf32>
    %62 = vector.multi_reduction <add>, %61, %cst_26 [1] : vector<8x128xf32> to vector<8xf32>
    %63 = vector.shape_cast %62 : vector<8xf32> to vector<8x1xf32>
    %64 = tpu.reciprocal %63 {approx = true} : vector<8x1xf32> -> vector<8x1xf32>
    %65 = vector.broadcast %64 : vector<8x1xf32> to vector<8x128xf32>
    %66 = arith.mulf %61, %65 : vector<8x128xf32>
    %cst_27 = arith.constant dense<0.000000e+00> : vector<8x32xf32>
    %67 = tpu.matmul %66, %37, %cst_27 {dimension_numbers = #tpu.dot_dimension_numbers<[1], [1], [0], [0], [0, 0, 1, 0], [], []>} : vector<8x128xf32>, vector<32x128xf32>, vector<8x32xf32> -> vector<8x32xf32>
    %c1_28 = arith.constant 1 : index
    %c0_29 = arith.constant 0 : index
    %c0_30 = arith.constant 0 : index
    %68 = vector.load %arg3[%c1_28, %c0_29, %c0_30] : memref<2x8x32xf32, #tpu.memory_space<vmem>>, vector<1x8x32xf32>
    %69 = vector.shape_cast %68 : vector<1x8x32xf32> to vector<8x32xf32>
    %70 = vector.shape_cast %67 : vector<8x32xf32> to vector<1x8x32xf32>
    tpu.vector_store %arg3[%c1_28, %c0_29, %c0_30], %70 {strides = array<i32>} : memref<2x8x32xf32, #tpu.memory_space<vmem>>, vector<1x8x32xf32>,
    return
  }
  func.func @transform_0(%arg0: i32) -> (i32, i32, i32) {
    %c0_i32 = arith.constant 0 : i32
    %c0_i32_0 = arith.constant 0 : i32
    %c0_i32_1 = arith.constant 0 : i32
    %c0_i32_2 = arith.constant 0 : i32
    return %c0_i32, %c0_i32_0, %c0_i32_1 : i32, i32, i32
  }
  func.func @transform_1(%arg0: i32) -> (i32, i32) {
    %c0_i32 = arith.constant 0 : i32
    %c0_i32_0 = arith.constant 0 : i32
    %c0_i32_1 = arith.constant 0 : i32
    return %c0_i32, %c0_i32_0 : i32, i32
  }
  func.func @transform_2(%arg0: i32) -> (i32, i32, i32) {
    %c0_i32 = arith.constant 0 : i32
    %c0_i32_0 = arith.constant 0 : i32
    %c0_i32_1 = arith.constant 0 : i32
    %c0_i32_2 = arith.constant 0 : i32
    return %c0_i32, %c0_i32_0, %c0_i32_1 : i32, i32, i32
  }
}

</mosaic_0001>

<llo_original>
// kernel: diff_pool_forward.1
$region0: #{diff_pool_forward.1}
  #allocation0 [shape = 'u32[]', space=smem, size = 0x4, offset = 0x4, fixed_abs, tag = 'smem constant byte address 0x4 - core index']
  #allocation1 [shape = 'u32[144,128]{1,0:T(1,128)}', space=vmem, size = 0x12000, scoped, tag = 'internal scratch']
  %s0 = inlined_call_operand.hbm [shape: f32[2,32,128], index: 0, kind: input, shape index: {}]
  %s1 = inlined_call_operand.hbm [shape: f32[8,32], index: 1, kind: input, shape index: {}]
  %s2 = inlined_call_operand.hbm [shape: f32[2,8,32], index: 2, kind: output, shape index: {}]
  %s3 = sld [smem:[#allocation0]]
  $region26: #{diff_pool_forward.1} parent=0
    _
  %s5 = ssub.s32 1, %s3
  %s6 = scalar_select 0, %s5, %s3
  $region1: #{diff_pool_forward.1} parent=0
    #allocation2 [shape = 'u8[32768]{0}', space=vmem, size = 0x8000, scoped, tag = 'input window, operand 0, single buffered']
    #allocation3 [shape = 's32[1]{0}', space=sflag, size = 0x4, scoped, tag = 'scoped memory for diff_pool_forward.1']
    #allocation4 [shape = 's32[1]{0}', space=sflag, size = 0x4, scoped, tag = 'scoped memory for diff_pool_forward.1']
    #allocation5 [shape = 'u8[4096]{0}', space=vmem, size = 0x1000, scoped, tag = 'input window, operand 1, single buffered']
    #allocation6 [shape = 's32[1]{0}', space=sflag, size = 0x4, scoped, tag = 'scoped memory for diff_pool_forward.1']
    #allocation7 [shape = 'u8[8192]{0}', space=vmem, size = 0x2000, scoped, tag = 'output window, operand 0, single buffered']
    %7 = vsyncpa [#allocation3], 0
    %8 = vsyncpa [#allocation6], 0
    %9 = vsyncpa [#allocation4], 0
    // Predicated region
    $region2: #{diff_pool_forward.1} parent=1 // pred_check
      _
    $region3: #{diff_pool_forward.1} parent=1 // pred_check_branch
      %11 = sbr.rel (0) target = $region5
    $region4: #{diff_pool_forward.1} parent=1 // pred_region
      %s13 = ssub.s32 1024, 1024
      %14 = vsyncadd [#allocation3], %s13
      %s15 = sshll.u32 [#allocation2], 4
      %s16 = int_to_ptr.vmem [resolvable:$true] %s15
      %21 = dma.hbm_to_vmem [thread:$0]  %s0, 1024, %s16, [#allocation3], 128, 128, 8
    $region5: #{diff_pool_forward.1} parent=1 // pred_fallthru
      _
    // Predicated region
    $region6: #{diff_pool_forward.1} parent=1 // pred_check
      _
    $region7: #{diff_pool_forward.1} parent=1 // pred_check_branch
      %23 = sbr.rel (0) target = $region9
    $region8: #{diff_pool_forward.1} parent=1 // pred_region
      %s25 = ssub.s32 128, 128
      %26 = vsyncadd [#allocation6], %s25
      %s28 = sshll.u32 [#allocation5], 4
      %s29 = int_to_ptr.vmem [resolvable:$true] %s28
      %31 = dma.hbm_to_vmem [thread:$0]  %s1, 128, %s29, [#allocation6]
    $region9: #{diff_pool_forward.1} parent=1 // pred_fallthru
      _
    // Predicated region
    $region10: #{diff_pool_forward.1} parent=1 // pred_check
      _
    $region11: #{diff_pool_forward.1} parent=1 // pred_check_branch
      %33 = sbr.rel (0) target = $region13
    $region12: #{diff_pool_forward.1} parent=1 // pred_region
      %34 = dma.done [#allocation3], 1024
    $region13: #{diff_pool_forward.1} parent=1 // pred_fallthru
      _
    // Predicated region
    $region14: #{diff_pool_forward.1} parent=1 // pred_check
      _
    $region15: #{diff_pool_forward.1} parent=1 // pred_check_branch
      %36 = sbr.rel (0) target = $region17
    $region16: #{diff_pool_forward.1} parent=1 // pred_region
      %37 = dma.done [#allocation6], 128
    $region17: #{diff_pool_forward.1} parent=1 // pred_fallthru
      _
    %v38 = vld [vmem:[#allocation5] sm:$0xff]
    %v39 = vld [vmem:[#allocation2] sm:$0xff]
    %v40 = vld [vmem:[#allocation2 + $0x8] sm:$0xff]
    %v41 = vld [vmem:[#allocation2 + $0x10] sm:$0xff]
    %v42 = vld [vmem:[#allocation2 + $0x18] sm:$0xff]
    %43 = vadd.xlane.f32.xlu0 %v39
    %v44 = vpop.xlane.xlu0 %43
    %45 = vadd.xlane.f32.xlu0 %v40
    %v46 = vpop.xlane.xlu0 %45
    %47 = vadd.xlane.f32.xlu0 %v41
    %v48 = vpop.xlane.xlu0 %47
    %49 = vadd.xlane.f32.xlu0 %v42
    %v50 = vpop.xlane.xlu0 %49
    %v51 = vrcp.pop 128.0
    %v52 = vmul.f32 %v44, %v51
    %v53 = vmul.f32 %v46, %v51
    %v54 = vmul.f32 %v48, %v51
    %v55 = vmul.f32 %v50, %v51
    %v56 = vsub.f32 %v39, %v52
    %v57 = vsub.f32 %v40, %v53
    %v58 = vsub.f32 %v41, %v54
    %v59 = vsub.f32 %v42, %v55
    %v60 = vmul.f32 %v56, %v56
    %v61 = vmul.f32 %v57, %v57
    %v62 = vmul.f32 %v58, %v58
    %v63 = vmul.f32 %v59, %v59
    %64 = vadd.xlane.f32.xlu0 %v60
    %v65 = vpop.xlane.xlu0 %64
    %66 = vadd.xlane.f32.xlu0 %v61
    %v67 = vpop.xlane.xlu0 %66
    %68 = vadd.xlane.f32.xlu0 %v62
    %v69 = vpop.xlane.xlu0 %68
    %70 = vadd.xlane.f32.xlu0 %v63
    %v71 = vpop.xlane.xlu0 %70
    %v72 = vmul.f32 %v65, %v51
    %v73 = vmul.f32 %v67, %v51
    %v74 = vmul.f32 %v69, %v51
    %v75 = vmul.f32 %v71, %v51
    %v76 = vadd.f32 %v72, 0.001
    %v77 = vadd.f32 %v73, 0.001
    %v78 = vadd.f32 %v74, 0.001
    %v79 = vadd.f32 %v75, 0.001
    %v80 = vrsqrt.pop %v76
    %v81 = vrsqrt.pop %v77
    %v82 = vrsqrt.pop %v78
    %v83 = vrsqrt.pop %v79
    %v84 = vmul.f32 %v56, %v80
    %v85 = vmul.f32 %v57, %v81
    %v86 = vmul.f32 %v58, %v82
    %v87 = vmul.f32 %v59, %v83
    %v88 = vmax.f32 %v84, 0.0
    %v89 = vmax.f32 %v85, 0.0
    %v90 = vmax.f32 %v86, 0.0
    %v91 = vmax.f32 %v87, 0.0
    %vm92 = vcmask 261120
    %v94 = vsel %vm92, %v38, 0
    %96 = vmatprep.subr.mxu0 0.0
    %97 = vmatpush1.msra.mxu0 0.0
    %98 = vmatprep.subr.mxu0 0.0
    %99 = vmatpush1.msra.mxu0 0.0
    %100 = vmatprep.subr.mxu0 0.0
    %101 = vmatpush1.msra.mxu0 0.0
    %102 = vmatprep.subr.mxu0 0.0
    %103 = vmatpush1.msra.mxu0 0.0
    %104 = vmatprep.subr.mxu0 0.0
    %105 = vmatpush1.msra.mxu0 0.0
    %106 = vmatprep.subr.mxu0 0.0
    %107 = vmatpush1.msra.mxu0 0.0
    %108 = vmatprep.subr.mxu0 0.0
    %109 = vmatpush1.msra.mxu0 0.0
    %110 = vmatprep.subr.mxu0 0.0
    %111 = vmatpush1.msra.mxu0 0.0
    %112 = vmatprep.subr.mxu0 0.0
    %113 = vmatpush1.msra.mxu0 0.0
    %114 = vmatprep.subr.mxu0 0.0
    %115 = vmatpush1.msra.mxu0 0.0
    %116 = vmatprep.subr.mxu0 0.0
    %117 = vmatpush1.msra.mxu0 0.0
    %118 = vmatprep.subr.mxu0 0.0
    %119 = vmatpush1.msra.mxu0 0.0
    %120 = vmatprep.subr.mxu0 0.0
    %121 = vmatpush1.msra.mxu0 %v91
    %122 = vmatprep.subr.mxu0 0.0
    %123 = vmatpush1.msra.mxu0 %v90
    %124 = vmatprep.subr.mxu0 0.0
    %125 = vmatpush1.msra.mxu0 %v89
    %126 = vmatprep.subr.mxu0 0.0
    %127 = vmatpush1.msra.mxu0 %v88
    %128 = vmatprep.subr.mxu0 0.0
    %129 = vmatpush2.msra.mxu0 0.0
    %130 = vmatprep.subr.mxu0 0.0
    %131 = vmatpush2.msra.mxu0 0.0
    %132 = vmatprep.subr.mxu0 0.0
    %133 = vmatpush2.msra.mxu0 0.0
    %134 = vmatprep.subr.mxu0 0.0
    %135 = vmatpush2.msra.mxu0 0.0
    %136 = vmatprep.subr.mxu0 0.0
    %137 = vmatpush2.msra.mxu0 0.0
    %138 = vmatprep.subr.mxu0 0.0
    %139 = vmatpush2.msra.mxu0 0.0
    %140 = vmatprep.subr.mxu0 0.0
    %141 = vmatpush2.msra.mxu0 0.0
    %142 = vmatprep.subr.mxu0 0.0
    %143 = vmatpush2.msra.mxu0 0.0
    %144 = vmatprep.subr.mxu0 0.0
    %145 = vmatpush2.msra.mxu0 0.0
    %146 = vmatprep.subr.mxu0 0.0
    %147 = vmatpush2.msra.mxu0 0.0
    %148 = vmatprep.subr.mxu0 0.0
    %149 = vmatpush2.msra.mxu0 0.0
    %150 = vmatprep.subr.mxu0 0.0
    %151 = vmatpush2.msra.mxu0 0.0
    %152 = vmatprep.subr.mxu0 0.0
    %153 = vmatpush2.msra.mxu0 0.0
    %154 = vmatprep.subr.mxu0 0.0
    %155 = vmatpush2.msra.mxu0 0.0
    %156 = vmatprep.subr.mxu0 0.0
    %157 = vmatpush2.msra.mxu0 0.0
    %158 = vmatprep.subr.mxu0 0.0
    %159 = vmatpush2.msra.mxu0 0.0
    %160 = vmatprep.mubr.f32.mxu0 0.0
    %161 = vmatmul.mubr.f32.gmra.mxu0 %v94
    %v162 = vpop.f32.mrf.mxu0
    %v163 = vadd.f32 0.0, %v162
    %v164 = vpop.f32.mrf.mxu0
    %165 = vdwg.mxu0
    %166 = vmax.xlane.f32.xlu0 %v163
    %v167 = vpop.xlane.xlu0 %166
    %v168 = vsub.f32 %v163, %v167
    %v169 = vmul.f32 %v168, 1.442695
    %v170 = vpow.pop %v169
    %171 = vadd.xlane.f32.xlu0 %v170
    %v172 = vpop.xlane.xlu0 %171
    %v173 = vrcp.pop %v172
    %v174 = vmul.f32 %v170, %v173
    %175 = vmatprep.subr.mxu0 0.0
    %176 = vmatpush1.xpose.msra.mxu0 0.0
    %177 = vmatprep.subr.mxu0 0.0
    %178 = vmatpush1.xpose.msra.mxu0 0.0
    %179 = vmatprep.subr.mxu0 0.0
    %180 = vmatpush1.xpose.msra.mxu0 0.0
    %181 = vmatprep.subr.mxu0 0.0
    %182 = vmatpush1.xpose.msra.mxu0 0.0
    %183 = vmatprep.subr.mxu0 0.0
    %184 = vmatpush1.xpose.msra.mxu0 0.0
    %185 = vmatprep.subr.mxu0 0.0
    %186 = vmatpush1.xpose.msra.mxu0 0.0
    %187 = vmatprep.subr.mxu0 0.0
    %188 = vmatpush1.xpose.msra.mxu0 0.0
    %189 = vmatprep.subr.mxu0 0.0
    %190 = vmatpush1.xpose.msra.mxu0 0.0
    %191 = vmatprep.subr.mxu0 0.0
    %192 = vmatpush1.xpose.msra.mxu0 0.0
    %193 = vmatprep.subr.mxu0 0.0
    %194 = vmatpush1.xpose.msra.mxu0 0.0
    %195 = vmatprep.subr.mxu0 0.0
    %196 = vmatpush1.xpose.msra.mxu0 0.0
    %197 = vmatprep.subr.mxu0 0.0
    %198 = vmatpush1.xpose.msra.mxu0 0.0
    %199 = vmatprep.subr.mxu0 0.0
    %200 = vmatpush1.xpose.msra.mxu0 %v42
    %201 = vmatprep.subr.mxu0 0.0
    %202 = vmatpush1.xpose.msra.mxu0 %v41
    %203 = vmatprep.subr.mxu0 0.0
    %204 = vmatpush1.xpose.msra.mxu0 %v40
    %205 = vmatprep.subr.mxu0 0.0
    %206 = vmatpush1.xpose.msra.mxu0 %v39
    %207 = vmatprep.subr.mxu0 0.0
    %208 = vmatpush2.xpose.msra.mxu0 0.0
    %209 = vmatprep.subr.mxu0 0.0
    %210 = vmatpush2.xpose.msra.mxu0 0.0
    %211 = vmatprep.subr.mxu0 0.0
    %212 = vmatpush2.xpose.msra.mxu0 0.0
    %213 = vmatprep.subr.mxu0 0.0
    %214 = vmatpush2.xpose.msra.mxu0 0.0
    %215 = vmatprep.subr.mxu0 0.0
    %216 = vmatpush2.xpose.msra.mxu0 0.0
    %217 = vmatprep.subr.mxu0 0.0
    %218 = vmatpush2.xpose.msra.mxu0 0.0
    %219 = vmatprep.subr.mxu0 0.0
    %220 = vmatpush2.xpose.msra.mxu0 0.0
    %221 = vmatprep.subr.mxu0 0.0
    %222 = vmatpush2.xpose.msra.mxu0 0.0
    %223 = vmatprep.subr.mxu0 0.0
    %224 = vmatpush2.xpose.msra.mxu0 0.0
    %225 = vmatprep.subr.mxu0 0.0
    %226 = vmatpush2.xpose.msra.mxu0 0.0
    %227 = vmatprep.subr.mxu0 0.0
    %228 = vmatpush2.xpose.msra.mxu0 0.0
    %229 = vmatprep.subr.mxu0 0.0
    %230 = vmatpush2.xpose.msra.mxu0 0.0
    %231 = vmatprep.subr.mxu0 0.0
    %232 = vmatpush2.xpose.msra.mxu0 0.0
    %233 = vmatprep.subr.mxu0 0.0
    %234 = vmatpush2.xpose.msra.mxu0 0.0
    %235 = vmatprep.subr.mxu0 0.0
    %236 = vmatpush2.xpose.msra.mxu0 0.0
    %237 = vmatprep.subr.mxu0 0.0
    %238 = vmatpush2.xpose.msra.mxu0 0.0
    %239 = vmatprep.mubr.f32.mxu0 0.0
    %240 = vmatmul.mubr.f32.gmra.mxu0 %v174
    %v241 = vpop.f32.mrf.mxu0
    %v242 = vadd.f32 0.0, %v241
    %v243 = vpop.f32.mrf.mxu0
    %244 = vdwg.mxu0
    %245 = vst.msk [vmem:[#allocation7] sm:$0xff] %vm92, %v242
    %s246 = scalar_lea.vmem [#allocation2], 32
    %v247 = vld [vmem:[%s246] sm:$0xff]
    %v248 = vld [vmem:[%s246 + $0x8] sm:$0xff]
    %v249 = vld [vmem:[%s246 + $0x10] sm:$0xff]
    %v250 = vld [vmem:[%s246 + $0x18] sm:$0xff]
    %251 = vadd.xlane.f32.xlu0 %v247
    %v252 = vpop.xlane.xlu0 %251
    %253 = vadd.xlane.f32.xlu0 %v248
    %v254 = vpop.xlane.xlu0 %253
    %255 = vadd.xlane.f32.xlu0 %v249
    %v256 = vpop.xlane.xlu0 %255
    %257 = vadd.xlane.f32.xlu0 %v250
    %v258 = vpop.xlane.xlu0 %257
    %v259 = vmul.f32 %v252, %v51
    %v260 = vmul.f32 %v254, %v51
    %v261 = vmul.f32 %v256, %v51
    %v262 = vmul.f32 %v258, %v51
    %v263 = vsub.f32 %v247, %v259
    %v264 = vsub.f32 %v248, %v260
    %v265 = vsub.f32 %v249, %v261
    %v266 = vsub.f32 %v250, %v262
    %v267 = vmul.f32 %v263, %v263
    %v268 = vmul.f32 %v264, %v264
    %v269 = vmul.f32 %v265, %v265
    %v270 = vmul.f32 %v266, %v266
    %271 = vadd.xlane.f32.xlu0 %v267
    %v272 = vpop.xlane.xlu0 %271
    %273 = vadd.xlane.f32.xlu0 %v268
    %v274 = vpop.xlane.xlu0 %273
    %275 = vadd.xlane.f32.xlu0 %v269
    %v276 = vpop.xlane.xlu0 %275
    %277 = vadd.xlane.f32.xlu0 %v270
    %v278 = vpop.xlane.xlu0 %277
    %v279 = vmul.f32 %v272, %v51
    %v280 = vmul.f32 %v274, %v51
    %v281 = vmul.f32 %v276, %v51
    %v282 = vmul.f32 %v278, %v51
    %v283 = vadd.f32 %v279, 0.001
    %v284 = vadd.f32 %v280, 0.001
    %v285 = vadd.f32 %v281, 0.001
    %v286 = vadd.f32 %v282, 0.001
    %v287 = vrsqrt.pop %v283
    %v288 = vrsqrt.pop %v284
    %v289 = vrsqrt.pop %v285
    %v290 = vrsqrt.pop %v286
    %v291 = vmul.f32 %v263, %v287
    %v292 = vmul.f32 %v264, %v288
    %v293 = vmul.f32 %v265, %v289
    %v294 = vmul.f32 %v266, %v290
    %v295 = vmax.f32 %v291, 0.0
    %v296 = vmax.f32 %v292, 0.0
    %v297 = vmax.f32 %v293, 0.0
    %v298 = vmax.f32 %v294, 0.0
    %299 = vmatprep.subr.mxu0 0.0
    %300 = vmatpush1.msra.mxu0 0.0
    %301 = vmatprep.subr.mxu0 0.0
    %302 = vmatpush1.msra.mxu0 0.0
    %303 = vmatprep.subr.mxu0 0.0
    %304 = vmatpush1.msra.mxu0 0.0
    %305 = vmatprep.subr.mxu0 0.0
    %306 = vmatpush1.msra.mxu0 0.0
    %307 = vmatprep.subr.mxu0 0.0
    %308 = vmatpush1.msra.mxu0 0.0
    %309 = vmatprep.subr.mxu0 0.0
    %310 = vmatpush1.msra.mxu0 0.0
    %311 = vmatprep.subr.mxu0 0.0
    %312 = vmatpush1.msra.mxu0 0.0
    %313 = vmatprep.subr.mxu0 0.0
    %314 = vmatpush1.msra.mxu0 0.0
    %315 = vmatprep.subr.mxu0 0.0
    %316 = vmatpush1.msra.mxu0 0.0
    %317 = vmatprep.subr.mxu0 0.0
    %318 = vmatpush1.msra.mxu0 0.0
    %319 = vmatprep.subr.mxu0 0.0
    %320 = vmatpush1.msra.mxu0 0.0
    %321 = vmatprep.subr.mxu0 0.0
    %322 = vmatpush1.msra.mxu0 0.0
    %323 = vmatprep.subr.mxu0 0.0
    %324 = vmatpush1.msra.mxu0 %v298
    %325 = vmatprep.subr.mxu0 0.0
    %326 = vmatpush1.msra.mxu0 %v297
    %327 = vmatprep.subr.mxu0 0.0
    %328 = vmatpush1.msra.mxu0 %v296
    %329 = vmatprep.subr.mxu0 0.0
    %330 = vmatpush1.msra.mxu0 %v295
    %331 = vmatprep.subr.mxu0 0.0
    %332 = vmatpush2.msra.mxu0 0.0
    %333 = vmatprep.subr.mxu0 0.0
    %334 = vmatpush2.msra.mxu0 0.0
    %335 = vmatprep.subr.mxu0 0.0
    %336 = vmatpush2.msra.mxu0 0.0
    %337 = vmatprep.subr.mxu0 0.0
    %338 = vmatpush2.msra.mxu0 0.0
    %339 = vmatprep.subr.mxu0 0.0
    %340 = vmatpush2.msra.mxu0 0.0
    %341 = vmatprep.subr.mxu0 0.0
    %342 = vmatpush2.msra.mxu0 0.0
    %343 = vmatprep.subr.mxu0 0.0
    %344 = vmatpush2.msra.mxu0 0.0
    %345 = vmatprep.subr.mxu0 0.0
    %346 = vmatpush2.msra.mxu0 0.0
    %347 = vmatprep.subr.mxu0 0.0
    %348 = vmatpush2.msra.mxu0 0.0
    %349 = vmatprep.subr.mxu0 0.0
    %350 = vmatpush2.msra.mxu0 0.0
    %351 = vmatprep.subr.mxu0 0.0
    %352 = vmatpush2.msra.mxu0 0.0
    %353 = vmatprep.subr.mxu0 0.0
    %354 = vmatpush2.msra.mxu0 0.0
    %355 = vmatprep.subr.mxu0 0.0
    %356 = vmatpush2.msra.mxu0 0.0
    %357 = vmatprep.subr.mxu0 0.0
    %358 = vmatpush2.msra.mxu0 0.0
    %359 = vmatprep.subr.mxu0 0.0
    %360 = vmatpush2.msra.mxu0 0.0
    %361 = vmatprep.subr.mxu0 0.0
    %362 = vmatpush2.msra.mxu0 0.0
    %363 = vmatprep.mubr.f32.mxu0 0.0
    %364 = vmatmul.mubr.f32.gmra.mxu0 %v94
    %v365 = vpop.f32.mrf.mxu0
    %v366 = vadd.f32 0.0, %v365
    %v367 = vpop.f32.mrf.mxu0
    %368 = vdwg.mxu0
    %369 = vmax.xlane.f32.xlu0 %v366
    %v370 = vpop.xlane.xlu0 %369
    %v371 = vsub.f32 %v366, %v370
    %v372 = vmul.f32 %v371, 1.442695
    %v373 = vpow.pop %v372
    %374 = vadd.xlane.f32.xlu0 %v373
    %v375 = vpop.xlane.xlu0 %374
    %v376 = vrcp.pop %v375
    %v377 = vmul.f32 %v373, %v376
    %378 = vmatprep.subr.mxu0 0.0
    %379 = vmatpush1.xpose.msra.mxu0 0.0
    %380 = vmatprep.subr.mxu0 0.0
    %381 = vmatpush1.xpose.msra.mxu0 0.0
    %382 = vmatprep.subr.mxu0 0.0
    %383 = vmatpush1.xpose.msra.mxu0 0.0
    %384 = vmatprep.subr.mxu0 0.0
    %385 = vmatpush1.xpose.msra.mxu0 0.0
    %386 = vmatprep.subr.mxu0 0.0
    %387 = vmatpush1.xpose.msra.mxu0 0.0
    %388 = vmatprep.subr.mxu0 0.0
    %389 = vmatpush1.xpose.msra.mxu0 0.0
    %390 = vmatprep.subr.mxu0 0.0
    %391 = vmatpush1.xpose.msra.mxu0 0.0
    %392 = vmatprep.subr.mxu0 0.0
    %393 = vmatpush1.xpose.msra.mxu0 0.0
    %394 = vmatprep.subr.mxu0 0.0
    %395 = vmatpush1.xpose.msra.mxu0 0.0
    %396 = vmatprep.subr.mxu0 0.0
    %397 = vmatpush1.xpose.msra.mxu0 0.0
    %398 = vmatprep.subr.mxu0 0.0
    %399 = vmatpush1.xpose.msra.mxu0 0.0
    %400 = vmatprep.subr.mxu0 0.0
    %401 = vmatpush1.xpose.msra.mxu0 0.0
    %402 = vmatprep.subr.mxu0 0.0
    %403 = vmatpush1.xpose.msra.mxu0 %v250
    %404 = vmatprep.subr.mxu0 0.0
    %405 = vmatpush1.xpose.msra.mxu0 %v249
    %406 = vmatprep.subr.mxu0 0.0
    %407 = vmatpush1.xpose.msra.mxu0 %v248
    %408 = vmatprep.subr.mxu0 0.0
    %409 = vmatpush1.xpose.msra.mxu0 %v247
    %410 = vmatprep.subr.mxu0 0.0
    %411 = vmatpush2.xpose.msra.mxu0 0.0
    %412 = vmatprep.subr.mxu0 0.0
    %413 = vmatpush2.xpose.msra.mxu0 0.0
    %414 = vmatprep.subr.mxu0 0.0
    %415 = vmatpush2.xpose.msra.mxu0 0.0
    %416 = vmatprep.subr.mxu0 0.0
    %417 = vmatpush2.xpose.msra.mxu0 0.0
    %418 = vmatprep.subr.mxu0 0.0
    %419 = vmatpush2.xpose.msra.mxu0 0.0
    %420 = vmatprep.subr.mxu0 0.0
    %421 = vmatpush2.xpose.msra.mxu0 0.0
    %422 = vmatprep.subr.mxu0 0.0
    %423 = vmatpush2.xpose.msra.mxu0 0.0
    %424 = vmatprep.subr.mxu0 0.0
    %425 = vmatpush2.xpose.msra.mxu0 0.0
    %426 = vmatprep.subr.mxu0 0.0
    %427 = vmatpush2.xpose.msra.mxu0 0.0
    %428 = vmatprep.subr.mxu0 0.0
    %429 = vmatpush2.xpose.msra.mxu0 0.0
    %430 = vmatprep.subr.mxu0 0.0
    %431 = vmatpush2.xpose.msra.mxu0 0.0
    %432 = vmatprep.subr.mxu0 0.0
    %433 = vmatpush2.xpose.msra.mxu0 0.0
    %434 = vmatprep.subr.mxu0 0.0
    %435 = vmatpush2.xpose.msra.mxu0 0.0
    %436 = vmatprep.subr.mxu0 0.0
    %437 = vmatpush2.xpose.msra.mxu0 0.0
    %438 = vmatprep.subr.mxu0 0.0
    %439 = vmatpush2.xpose.msra.mxu0 0.0
    %440 = vmatprep.subr.mxu0 0.0
    %441 = vmatpush2.xpose.msra.mxu0 0.0
    %442 = vmatprep.mubr.f32.mxu0 0.0
    %443 = vmatmul.mubr.f32.gmra.mxu0 %v377
    %v444 = vpop.f32.mrf.mxu0
    %v445 = vadd.f32 0.0, %v444
    %v446 = vpop.f32.mrf.mxu0
    %447 = vdwg.mxu0
    %s448 = scalar_lea.vmem [#allocation7], 8
    %449 = vst.msk [vmem:[%s448] sm:$0xff] %vm92, %v445
    // Predicated region
    $region18: #{diff_pool_forward.1} parent=1 // pred_check
      _
    $region19: #{diff_pool_forward.1} parent=1 // pred_check_branch
      %451 = sbr.rel (0) target = $region21
    $region20: #{diff_pool_forward.1} parent=1 // pred_region
      %s453 = ssub.s32 256, 256
      %454 = vsyncadd [#allocation4], %s453
      %s455 = sshll.u32 [#allocation7], 4
      %s456 = int_to_ptr.vmem [resolvable:$true] %s455
      %461 = dma.vmem_to_hbm [thread:$0]  %s456, 256, %s2, [#allocation4], 128, 128, 8
    $region21: #{diff_pool_forward.1} parent=1 // pred_fallthru
      _
    // Predicated region
    $region22: #{diff_pool_forward.1} parent=1 // pred_check
      _
    $region23: #{diff_pool_forward.1} parent=1 // pred_check_branch
      %463 = sbr.rel (0) target = $region25
    $region24: #{diff_pool_forward.1} parent=1 // pred_region
      %464 = dma.done [#allocation4], 256
    $region25: #{diff_pool_forward.1} parent=1 // pred_fallthru
      _
    %465 = vsyncpa [#allocation3], 1
    %466 = vsyncpa [#allocation6], 1
    %467 = vsyncpa [#allocation4], 1

</llo_original>
